<compile_context>
chip_gen: v6e
topology: v6e:2x2x1
jax: 0.10.0
libtpu: 0.0.40
codegen_flags: <defaults>
</compile_context>

<pallas_src>
import jax
import jax.numpy as jnp
from jax import lax
from jax.experimental import pallas as pl
from jax.experimental.pallas import tpu as pltpu


# ---------------------------------------------------------------------------
# Fused Pallas kernel: upsample2x(nearest) + conv3x3(pad=1) + BN(eval) + ReLU
# One grid step = one batch element x one H-stripe; both row parities computed.
# ---------------------------------------------------------------------------
def _up_layer_kernel(x_ref, g_ref, scale_ref, shift_ref, o_even_ref, o_odd_ref):
    # x_ref     : (hs+2, (W+2)*Cin)          zero-padded, channel-folded input stripe
    # g_ref     : (4, (W+2)*Cin, 2*W*Cout)   banded phase weights, index = 2*a + r
    # scale_ref : (1, 2*W*Cout)              folded eval-mode BN scale (tiled over cols)
    # shift_ref : (1, 2*W*Cout)              folded eval-mode BN shift (conv bias incl.)
    # o_even_ref: (hs, 2*W*Cout)             output rows 2i   (flat, lane-dense)
    # o_odd_ref : (hs, 2*W*Cout)             output rows 2i+1 (flat, lane-dense)
    hs = o_even_ref.shape[0]
    scale = scale_ref[...]
    shift = shift_ref[...]
    for a, o_ref in ((0, o_even_ref), (1, o_odd_ref)):      # row parity
        # Column taps / column parity / Cin are folded into G's K axis; the two
        # row taps accumulate back-to-back into one f32 result (MRB-friendly).
        y = jnp.dot(x_ref[pl.ds(a, hs), :], g_ref[2 * a],
                    preferred_element_type=jnp.float32)
        y = y + jnp.dot(x_ref[pl.ds(a + 1, hs), :], g_ref[2 * a + 1],
                        preferred_element_type=jnp.float32)
        # Folded BN + ReLU on the flat row; stored as-is -> unmasked, copy-free vst.
        o_ref[...] = jnp.maximum(y * scale + shift, 0.0).astype(o_ref.dtype)


# ---------------------------------------------------------------------------
# Host-side constant preparation (weight-sized tensors only, done once)
# ---------------------------------------------------------------------------
def prepare_up_layer(params, W):
    """Build the banded polyphase weight matrices and flat BN scale/shift."""
    w = params["w_hwio"]                                   # (3, 3, Cin, Cout)
    Cin, Cout = w.shape[2], w.shape[3]
    Wp = W + 2
    # Nearest-2x polyphase tap combination: even parity [w0, w1+w2],
    # odd parity [w0+w1, w2] (same pattern for rows and columns).
    comb = jnp.array([[[1., 0., 0.], [0., 1., 1.]],
                      [[1., 1., 0.], [0., 0., 1.]]], w.dtype)      # (parity, tap, orig)
    # w4[a, b, r, s, cin, cout]: weight of tap (r, s) for output parity (a, b).
    w4 = jnp.einsum('apd,bqe,deio->abpqio', comb, comb, w)         # (2,2,2,2,Cin,Cout)
    # Banded matrix: G[a, r][p*Cin+ci, (2j+b)*Cout+co] = w4[a,b,r,s,ci,co], s = p-j-b.
    p_i = jnp.arange(Wp)[None, None, :, None]
    j_i = jnp.arange(W)[None, None, None, :]
    b_i = jnp.arange(2)[:, None, None, None]
    s_i = jnp.arange(2)[None, :, None, None]
    sel = (p_i == j_i + b_i + s_i).astype(w.dtype)                  # (b, s, p, j)
    g = jnp.einsum('bspj,abrsio->arpijbo', sel, w4)                 # (2,2,Wp,Cin,W,2,Cout)
    g = g.reshape(2, 2, Wp * Cin, 2 * W * Cout).reshape(4, Wp * Cin, 2 * W * Cout)
    scale_flat = jnp.tile(params["scale"].astype(jnp.float32), (1, 2 * W))  # (1, 2W*Cout)
    shift_flat = jnp.tile(params["shift"].astype(jnp.float32), (1, 2 * W))  # (1, 2W*Cout)
    return g, scale_flat, shift_flat


def _choose_stripe(H, B):
    # Prefer >= 8 grid steps total (>= 4 per v7x TensorCore) with the largest
    # stripe that divides H; production sizes would size hs from a VMEM budget.
    for hs in (8, 4, 2, 1):
        if H % hs == 0 and B * (H // hs) >= 8:
            return hs
    for hs in (8, 4, 2, 1):
        if H % hs == 0:
            return hs
    return 1


def _vmem_limit_bytes():
    # Per-generation scoped-VMEM limit (v5e/v6e: 128 MiB physical, v7x: 64 MiB).
    try:
        cap = int(pltpu.get_tpu_info().vmem_capacity_bytes)
        return int(min(cap // 2, 96 * 1024 * 1024))
    except Exception:   # query unavailable on this jax version -> safe default
        return 32 * 1024 * 1024


# ---------------------------------------------------------------------------
# Forward wrapper (jitted): layout prep -> pallas_call -> parity interleave
# ---------------------------------------------------------------------------
def _up_layer_forward_impl(x_nchw, g, scale_flat, shift_flat):
    B, Cin, H, W = x_nchw.shape
    Wp = W + 2
    W2C = g.shape[-1]                      # 2*W*Cout
    Cout = W2C // (2 * W)
    hs = _choose_stripe(H, B)
    assert H % hs == 0
    nT = H // hs

    # NCHW -> channel-folded, 1-pixel zero-padded rows: (B, H+2, (W+2)*Cin)
    x = jnp.transpose(x_nchw, (0, 2, 3, 1))
    xp = jnp.pad(x, ((0, 0), (1, 1), (1, 1), (0, 0))).reshape(B, H + 2, Wp * Cin)
    # Overlapping H-stripes (1-row halo each side), gathered once by XLA.
    rows = jnp.arange(nT)[:, None] * hs + jnp.arange(hs + 2)[None, :]
    x_strips = xp[:, rows, :]                                  # (B, nT, hs+2, Wp*Cin)

    out_sds = jax.ShapeDtypeStruct((B, nT, hs, W2C), x_nchw.dtype)
    o_even, o_odd = pl.pallas_call(
        _up_layer_kernel,
        out_shape=(out_sds, out_sds),
        grid=(B, nT),
        in_specs=[
            pl.BlockSpec((None, None, hs + 2, Wp * Cin), lambda b, t: (b, t, 0, 0)),
            pl.BlockSpec((4, Wp * Cin, W2C), lambda b, t: (0, 0, 0)),
            pl.BlockSpec((1, W2C), lambda b, t: (0, 0)),
            pl.BlockSpec((1, W2C), lambda b, t: (0, 0)),
        ],
        out_specs=(
            pl.BlockSpec((None, None, hs, W2C), lambda b, t: (b, t, 0, 0)),
            pl.BlockSpec((None, None, hs, W2C), lambda b, t: (b, t, 0, 0)),
        ),
        compiler_params=pltpu.CompilerParams(
            dimension_semantics=("parallel", "parallel"),
            vmem_limit_bytes=_vmem_limit_bytes(),
        ),
    )(x_strips, g, scale_flat, shift_flat)

    # Row-parity interleave + un-flatten; fuses with the NHWC->NCHW transpose the
    # PyTorch layout contract forces anyway (single XLA copy).
    y = jnp.stack((o_even, o_odd), axis=3)           # (B, nT, hs, 2, 2W*Cout)
    y = y.reshape(B, 2 * H, 2 * W, Cout)
    return jnp.transpose(y, (0, 3, 1, 2))             # NCHW


up_layer_forward = jax.jit(_up_layer_forward_impl)


# ---------------------------------------------------------------------------
# Deterministic parameter init + BN folding (eval mode)
# ---------------------------------------------------------------------------
def init_params(key, in_c, out_c, eps=1e-5):
    ks = jax.random.split(key, 6)
    w_hwio = 0.15 * jax.random.normal(ks[0], (3, 3, in_c, out_c), jnp.float32)
    bias = 0.10 * jax.random.normal(ks[1], (out_c,), jnp.float32)
    gamma = 1.0 + 0.10 * jax.random.normal(ks[2], (out_c,), jnp.float32)
    beta = 0.10 * jax.random.normal(ks[3], (out_c,), jnp.float32)
    mean = 0.05 * jax.random.normal(ks[4], (out_c,), jnp.float32)
    var = 0.9 + 0.2 * jax.random.uniform(ks[5], (out_c,), jnp.float32)
    s = gamma / jnp.sqrt(var + eps)
    return {
        "w_hwio": w_hwio,                                    # (3, 3, Cin, Cout)
        "scale": s.reshape(1, -1),                           # folded BN scale
        "shift": (beta + s * (bias - mean)).reshape(1, -1),  # folded BN shift (+bias)
    }


# ---------------------------------------------------------------------------
# Pure-JAX reference (XLA conv, HIGHEST precision) used as a correctness check
# ---------------------------------------------------------------------------
def ref_forward(x_nchw, params):
    x = jnp.transpose(x_nchw, (0, 2, 3, 1))
    xu = jnp.repeat(jnp.repeat(x, 2, axis=1), 2, axis=2)     # nearest-neighbour 2x
    y = lax.conv_general_dilated(
        xu, params["w_hwio"], (1, 1), ((1, 1), (1, 1)),
        dimension_numbers=("NHWC", "HWIO", "NHWC"),
        precision=lax.Precision.HIGHEST)
    y = jnp.maximum(y * params["scale"][0] + params["shift"][0], 0.0)
    return jnp.transpose(y, (0, 3, 1, 2))


if __name__ == "__main__":
    B, Cin, Cout, H, W = 2, 4, 8, 16, 16
    key = jax.random.PRNGKey(0)
    kx, kp = jax.random.split(key)
    x = jax.random.normal(kx, (B, Cin, H, W), jnp.float32)    # NCHW, like PyTorch
    params = init_params(kp, Cin, Cout)
    g, scale_flat, shift_flat = prepare_up_layer(params, W)

    out = up_layer_forward(x, g, scale_flat, shift_flat)
    out = jax.block_until_ready(out)
    assert out.shape == (B, Cout, 2 * H, 2 * W)

    ref = ref_forward(x, params)
    err = float(jnp.max(jnp.abs(out - ref)))
    # Kernel runs at default (single-pass) MXU precision while the reference uses
    # HIGHEST; tolerance sized for that rounding difference (inference parity).
    if err > 5e-2:
        raise AssertionError(f"Pallas output mismatch vs reference: max abs err = {err}")

    print("KERNEL_OK")
</pallas_src>

<mosaic_0001>
module attributes {stable_mosaic.version = 11 : i64} {
  func.func @_up_layer_kernel(%arg0: i32, %arg1: i32, %arg2: memref<1x1x6x72xf32, #tpu.memory_space<vmem>>, %arg3: memref<4x72x256xf32, #tpu.memory_space<vmem>>, %arg4: memref<1x256xf32, #tpu.memory_space<vmem>>, %arg5: memref<1x256xf32, #tpu.memory_space<vmem>>, %arg6: memref<1x1x4x256xf32, #tpu.memory_space<vmem>>, %arg7: memref<1x1x4x256xf32, #tpu.memory_space<vmem>>) attributes {dimension_semantics = [#tpu.dimension_semantics<parallel>, #tpu.dimension_semantics<parallel>], iteration_bounds = array<i64: 2, 4>, scalar_prefetch = 0 : i64, scratch_operands = 0 : i64, tpu.core_type = #tpu.core_type<tc>, window_params = [{transform_indices = @transform_0, window_bounds = array<i64: 1, 1, 6, 72>}, {pipeline_mode = #tpu.pipeline_mode<synchronous>, transform_indices = @transform_1, window_bounds = array<i64: 4, 72, 256>}, {pipeline_mode = #tpu.pipeline_mode<synchronous>, transform_indices = @transform_2, window_bounds = array<i64: 1, 256>}, {pipeline_mode = #tpu.pipeline_mode<synchronous>, transform_indices = @transform_3, window_bounds = array<i64: 1, 256>}, {transform_indices = @transform_4, window_bounds = array<i64: 1, 1, 4, 256>}, {transform_indices = @transform_5, window_bounds = array<i64: 1, 1, 4, 256>}]} {
    %c0 = arith.constant 0 : index
    %c0_0 = arith.constant 0 : index
    %0 = vector.load %arg4[%c0, %c0_0] : memref<1x256xf32, #tpu.memory_space<vmem>>, vector<1x256xf32>
    %c0_1 = arith.constant 0 : index
    %c0_2 = arith.constant 0 : index
    %1 = vector.load %arg5[%c0_1, %c0_2] : memref<1x256xf32, #tpu.memory_space<vmem>>, vector<1x256xf32>
    %c0_3 = arith.constant 0 : index
    %c0_4 = arith.constant 0 : index
    %c0_5 = arith.constant 0 : index
    %c0_6 = arith.constant 0 : index
    %2 = vector.load %arg2[%c0_3, %c0_4, %c0_5, %c0_6] : memref<1x1x6x72xf32, #tpu.memory_space<vmem>>, vector<1x1x4x72xf32>
    %3 = vector.shape_cast %2 : vector<1x1x4x72xf32> to vector<4x72xf32>
    %c0_7 = arith.constant 0 : index
    %c0_8 = arith.constant 0 : index
    %c0_9 = arith.constant 0 : index
    %4 = vector.load %arg3[%c0_7, %c0_8, %c0_9] : memref<4x72x256xf32, #tpu.memory_space<vmem>>, vector<1x72x256xf32>
    %5 = vector.shape_cast %4 : vector<1x72x256xf32> to vector<72x256xf32>
    %cst = arith.constant dense<0.000000e+00> : vector<4x256xf32>
    %6 = tpu.matmul %3, %5, %cst {dimension_numbers = #tpu.dot_dimension_numbers<[1], [0], [0], [1], [0, 0, 1, 1], [], []>} : vector<4x72xf32>, vector<72x256xf32>, vector<4x256xf32> -> vector<4x256xf32>
    %c0_10 = arith.constant 0 : index
    %c0_11 = arith.constant 0 : index
    %c1 = arith.constant 1 : index
    %c0_12 = arith.constant 0 : index
    %7 = vector.load %arg2[%c0_10, %c0_11, %c1, %c0_12] : memref<1x1x6x72xf32, #tpu.memory_space<vmem>>, vector<1x1x4x72xf32>
    %8 = vector.shape_cast %7 : vector<1x1x4x72xf32> to vector<4x72xf32>
    %c1_13 = arith.constant 1 : index
    %c0_14 = arith.constant 0 : index
    %c0_15 = arith.constant 0 : index
    %9 = vector.load %arg3[%c1_13, %c0_14, %c0_15] : memref<4x72x256xf32, #tpu.memory_space<vmem>>, vector<1x72x256xf32>
    %10 = vector.shape_cast %9 : vector<1x72x256xf32> to vector<72x256xf32>
    %cst_16 = arith.constant dense<0.000000e+00> : vector<4x256xf32>
    %11 = tpu.matmul %8, %10, %cst_16 {dimension_numbers = #tpu.dot_dimension_numbers<[1], [0], [0], [1], [0, 0, 1, 1], [], []>} : vector<4x72xf32>, vector<72x256xf32>, vector<4x256xf32> -> vector<4x256xf32>
    %12 = arith.addf %6, %11 : vector<4x256xf32>
    %13 = vector.broadcast %0 : vector<1x256xf32> to vector<4x256xf32>
    %14 = arith.mulf %12, %13 : vector<4x256xf32>
    %15 = vector.broadcast %1 : vector<1x256xf32> to vector<4x256xf32>
    %16 = arith.addf %14, %15 : vector<4x256xf32>
    %cst_17 = arith.constant 0.000000e+00 : f32
    %17 = vector.broadcast %cst_17 : f32 to vector<4x256xf32>
    %18 = arith.maximumf %16, %17 : vector<4x256xf32>
    %c0_18 = arith.constant 0 : index
    %c0_19 = arith.constant 0 : index
    %c0_20 = arith.constant 0 : index
    %c0_21 = arith.constant 0 : index
    %19 = vector.load %arg6[%c0_18, %c0_19, %c0_20, %c0_21] : memref<1x1x4x256xf32, #tpu.memory_space<vmem>>, vector<1x1x4x256xf32>
    %20 = vector.shape_cast %19 : vector<1x1x4x256xf32> to vector<4x256xf32>
    %21 = vector.shape_cast %18 : vector<4x256xf32> to vector<1x1x4x256xf32>
    tpu.vector_store %arg6[%c0_18, %c0_19, %c0_20, %c0_21], %21 {strides = array<i32>} : memref<1x1x4x256xf32, #tpu.memory_space<vmem>>, vector<1x1x4x256xf32>,
    %c0_22 = arith.constant 0 : index
    %c0_23 = arith.constant 0 : index
    %c1_24 = arith.constant 1 : index
    %c0_25 = arith.constant 0 : index
    %22 = vector.load %arg2[%c0_22, %c0_23, %c1_24, %c0_25] : memref<1x1x6x72xf32, #tpu.memory_space<vmem>>, vector<1x1x4x72xf32>
    %23 = vector.shape_cast %22 : vector<1x1x4x72xf32> to vector<4x72xf32>
    %c2 = arith.constant 2 : index
    %c0_26 = arith.constant 0 : index
    %c0_27 = arith.constant 0 : index
    %24 = vector.load %arg3[%c2, %c0_26, %c0_27] : memref<4x72x256xf32, #tpu.memory_space<vmem>>, vector<1x72x256xf32>
    %25 = vector.shape_cast %24 : vector<1x72x256xf32> to vector<72x256xf32>
    %cst_28 = arith.constant dense<0.000000e+00> : vector<4x256xf32>
    %26 = tpu.matmul %23, %25, %cst_28 {dimension_numbers = #tpu.dot_dimension_numbers<[1], [0], [0], [1], [0, 0, 1, 1], [], []>} : vector<4x72xf32>, vector<72x256xf32>, vector<4x256xf32> -> vector<4x256xf32>
    %c0_29 = arith.constant 0 : index
    %c0_30 = arith.constant 0 : index
    %c2_31 = arith.constant 2 : index
    %c0_32 = arith.constant 0 : index
    %27 = vector.load %arg2[%c0_29, %c0_30, %c2_31, %c0_32] : memref<1x1x6x72xf32, #tpu.memory_space<vmem>>, vector<1x1x4x72xf32>
    %28 = vector.shape_cast %27 : vector<1x1x4x72xf32> to vector<4x72xf32>
    %c3 = arith.constant 3 : index
    %c0_33 = arith.constant 0 : index
    %c0_34 = arith.constant 0 : index
    %29 = vector.load %arg3[%c3, %c0_33, %c0_34] : memref<4x72x256xf32, #tpu.memory_space<vmem>>, vector<1x72x256xf32>
    %30 = vector.shape_cast %29 : vector<1x72x256xf32> to vector<72x256xf32>
    %cst_35 = arith.constant dense<0.000000e+00> : vector<4x256xf32>
    %31 = tpu.matmul %28, %30, %cst_35 {dimension_numbers = #tpu.dot_dimension_numbers<[1], [0], [0], [1], [0, 0, 1, 1], [], []>} : vector<4x72xf32>, vector<72x256xf32>, vector<4x256xf32> -> vector<4x256xf32>
    %32 = arith.addf %26, %31 : vector<4x256xf32>
    %33 = vector.broadcast %0 : vector<1x256xf32> to vector<4x256xf32>
    %34 = arith.mulf %32, %33 : vector<4x256xf32>
    %35 = vector.broadcast %1 : vector<1x256xf32> to vector<4x256xf32>
    %36 = arith.addf %34, %35 : vector<4x256xf32>
    %cst_36 = arith.constant 0.000000e+00 : f32
    %37 = vector.broadcast %cst_36 : f32 to vector<4x256xf32>
    %38 = arith.maximumf %36, %37 : vector<4x256xf32>
    %c0_37 = arith.constant 0 : index
    %c0_38 = arith.constant 0 : index
    %c0_39 = arith.constant 0 : index
    %c0_40 = arith.constant 0 : index
    %39 = vector.load %arg7[%c0_37, %c0_38, %c0_39, %c0_40] : memref<1x1x4x256xf32, #tpu.memory_space<vmem>>, vector<1x1x4x256xf32>
    %40 = vector.shape_cast %39 : vector<1x1x4x256xf32> to vector<4x256xf32>
    %41 = vector.shape_cast %38 : vector<4x256xf32> to vector<1x1x4x256xf32>
    tpu.vector_store %arg7[%c0_37, %c0_38, %c0_39, %c0_40], %41 {strides = array<i32>} : memref<1x1x4x256xf32, #tpu.memory_space<vmem>>, vector<1x1x4x256xf32>,
    return
  }
  func.func @transform_0(%arg0: i32, %arg1: i32) -> (i32, i32, i32, i32) {
    %c0_i32 = arith.constant 0 : i32
    %c0_i32_0 = arith.constant 0 : i32
    %c0_i32_1 = arith.constant 0 : i32
    return %arg0, %arg1, %c0_i32, %c0_i32_0 : i32, i32, i32, i32
  }
  func.func @transform_1(%arg0: i32, %arg1: i32) -> (i32, i32, i32) {
    %c0_i32 = arith.constant 0 : i32
    %c0_i32_0 = arith.constant 0 : i32
    %c0_i32_1 = arith.constant 0 : i32
    %c0_i32_2 = arith.constant 0 : i32
    return %c0_i32, %c0_i32_0, %c0_i32_1 : i32, i32, i32
  }
  func.func @transform_2(%arg0: i32, %arg1: i32) -> (i32, i32) {
    %c0_i32 = arith.constant 0 : i32
    %c0_i32_0 = arith.constant 0 : i32
    %c0_i32_1 = arith.constant 0 : i32
    return %c0_i32, %c0_i32_0 : i32, i32
  }
  func.func @transform_3(%arg0: i32, %arg1: i32) -> (i32, i32) {
    %c0_i32 = arith.constant 0 : i32
    %c0_i32_0 = arith.constant 0 : i32
    %c0_i32_1 = arith.constant 0 : i32
    return %c0_i32, %c0_i32_0 : i32, i32
  }
  func.func @transform_4(%arg0: i32, %arg1: i32) -> (i32, i32, i32, i32) {
    %c0_i32 = arith.constant 0 : i32
    %c0_i32_0 = arith.constant 0 : i32
    %c0_i32_1 = arith.constant 0 : i32
    return %arg0, %arg1, %c0_i32, %c0_i32_0 : i32, i32, i32, i32
  }
  func.func @transform_5(%arg0: i32, %arg1: i32) -> (i32, i32, i32, i32) {
    %c0_i32 = arith.constant 0 : i32
    %c0_i32_0 = arith.constant 0 : i32
    %c0_i32_1 = arith.constant 0 : i32
    return %arg0, %arg1, %c0_i32, %c0_i32_0 : i32, i32, i32, i32
  }
}

</mosaic_0001>

<llo_original>
// kernel: _up_layer_forward_impl.1
$region0: #{_up_layer_forward_impl.1}
  #allocation0 [shape = 'u32[]', space=smem, size = 0x4, offset = 0x4, fixed_abs, tag = 'smem constant byte address 0x4 - core index']
  #allocation1 [shape = 'u32[144,128]{1,0:T(1,128)}', space=vmem, size = 0x12000, scoped, tag = 'internal scratch']
  %s0 = inlined_call_operand.vmem [shape: f32[2,4,6,72], index: 0, kind: input, shape index: {}]
  %s1 = inlined_call_operand.vmem [shape: f32[4,72,256], index: 1, kind: input, shape index: {}]
  %s2 = inlined_call_operand.vmem [shape: f32[1,256], index: 2, kind: input, shape index: {}]
  %s3 = inlined_call_operand.vmem [shape: f32[1,256], index: 3, kind: input, shape index: {}]
  %s4 = inlined_call_operand.vmem [shape: f32[2,4,4,256], index: 4, kind: output, shape index: {0}]
  %s5 = inlined_call_operand.vmem [shape: f32[2,4,4,256], index: 5, kind: output, shape index: {1}]
  %6 = xla_tuple %s4, %s5
  %s7 = sld [smem:[#allocation0]]
  $region57: #{_up_layer_forward_impl.1} parent=0
    _
  %s9 = ssub.s32 1, %s7
  %s10 = scalar_select 0, %s9, %s7
  loop: start=0, step=1, limit=10
  $region2: #{_up_layer_forward_impl.1} parent=0 // loop_pre_header
    _
  $region3: #{_up_layer_forward_impl.1} parent=0 // loop_header
    %s12 = sphi 0, %s16
    %p13 = scmp.ge.s32.totalorder %s12, 10
    %s19 = sphi 0, %s31
    %s20 = sphi 0, %s27
    %s21 = sphi 0, %s19
    %s22 = sphi 0, %s20
    %s23 = sphi 0, %s21
    %s24 = sphi 0, %s22
    %s36 = sphi 0, %s38
    %s39 = sphi 0, %s36
    %s40 = sphi 0, %s39
    %s56 = sphi 0, %s40
    %s60 = sphi 0, %s60
    %s62 = sphi 0, %s60
    %s63 = sphi 0, %s62
    %s77 = sphi 0, %s63
    %s81 = sphi 0, %s81
    %s83 = sphi 0, %s81
    %s84 = sphi 0, %s83
    %s98 = sphi 0, %s84
    %s102 = sphi 0, %s102
    %s104 = sphi 0, %s102
    %s105 = sphi 0, %s104
    %s119 = sphi 0, %s105
    %s127 = sphi 0, %s129
    %s130 = sphi 0, %s127
    %s131 = sphi 0, %s130
    %s147 = sphi 0, %s131
    %s155 = sphi 0, %s157
    %s158 = sphi 0, %s155
    %s159 = sphi 0, %s158
    %s175 = sphi 0, %s159
  $region4: #{_up_layer_forward_impl.1} parent=0 // loop_header_branch
    %15 = sbr.rel (%p13) target = $region8
  $region5: #{_up_layer_forward_impl.1} parent=0 // loop_body
    %s17 = ssub.s32 %s12, 1
    %s18 = ssub.s32 %s12, 2
    %s25 = sadd.s32 1, %s20
    %p26 = scmp.ge.s32.totalorder %s25, 4
    %s27 = scalar_select %p26, 0, %s25
    %s28 = sadd.s32 1, %s19
    %s29 = scalar_select %p26, %s28, %s19
    %p30 = scmp.ge.s32.totalorder %s29, 2
    %s31 = scalar_select %p30, 0, %s29
    %s32 = ssub.s32 %s19, %s31
    %s33 = ssub.s32 %s20, %s27
    %s34 = sor.u32 %s32, %s33
    %p35 = scmp.eq.s32.totalorder %s34, 0
    %s37 = sadd.s32 %s36, 1
    %s38 = scalar_select %p35, %s36, %s37
    %p41 = pneg %p35
    %p42 = scmp.eq.s32.totalorder %s12, 7
    %p43 = por %p41, %p42
    %p44 = scmp.ne.s32.totalorder %s36, %s39
    %p45 = scmp.eq.s32.totalorder %s12, 0
    %p46 = por %p44, %p45
    %p47 = scmp.ne.s32.totalorder %s36, %s39
    %p48 = scmp.eq.s32.totalorder %s17, 7
    %p49 = por %p47, %p48
    %p50 = scmp.ne.s32.totalorder %s39, %s40
    %p51 = scmp.eq.s32.totalorder %s17, 0
    %p52 = por %p50, %p51
    %p53 = scmp.ne.s32.totalorder %s39, %s40
    %p54 = scmp.eq.s32.totalorder %s18, 7
    %p55 = por %p53, %p54
    %p57 = scmp.ne.s32.totalorder %s40, %s56
    %p58 = scmp.eq.s32.totalorder %s18, 0
    %p59 = por %p57, %p58
    %s61 = sadd.s32 %s60, 1
    %p64 = scmp.eq.s32.totalorder %s12, 7
    %p65 = scmp.ne.s32.totalorder %s60, %s62
    %p66 = scmp.eq.s32.totalorder %s12, 0
    %p67 = por %p65, %p66
    %p68 = scmp.ne.s32.totalorder %s60, %s62
    %p69 = scmp.eq.s32.totalorder %s17, 7
    %p70 = por %p68, %p69
    %p71 = scmp.ne.s32.totalorder %s62, %s63
    %p72 = scmp.eq.s32.totalorder %s17, 0
    %p73 = por %p71, %p72
    %p74 = scmp.ne.s32.totalorder %s62, %s63
    %p75 = scmp.eq.s32.totalorder %s18, 7
    %p76 = por %p74, %p75
    %p78 = scmp.ne.s32.totalorder %s63, %s77
    %p79 = scmp.eq.s32.totalorder %s18, 0
    %p80 = por %p78, %p79
    %s82 = sadd.s32 %s81, 1
    %p85 = scmp.eq.s32.totalorder %s12, 7
    %p86 = scmp.ne.s32.totalorder %s81, %s83
    %p87 = scmp.eq.s32.totalorder %s12, 0
    %p88 = por %p86, %p87
    %p89 = scmp.ne.s32.totalorder %s81, %s83
    %p90 = scmp.eq.s32.totalorder %s17, 7
    %p91 = por %p89, %p90
    %p92 = scmp.ne.s32.totalorder %s83, %s84
    %p93 = scmp.eq.s32.totalorder %s17, 0
    %p94 = por %p92, %p93
    %p95 = scmp.ne.s32.totalorder %s83, %s84
    %p96 = scmp.eq.s32.totalorder %s18, 7
    %p97 = por %p95, %p96
    %p99 = scmp.ne.s32.totalorder %s84, %s98
    %p100 = scmp.eq.s32.totalorder %s18, 0
    %p101 = por %p99, %p100
    %s103 = sadd.s32 %s102, 1
    %p106 = scmp.eq.s32.totalorder %s12, 7
    %p107 = scmp.ne.s32.totalorder %s102, %s104
    %p108 = scmp.eq.s32.totalorder %s12, 0
    %p109 = por %p107, %p108
    %p110 = scmp.ne.s32.totalorder %s102, %s104
    %p111 = scmp.eq.s32.totalorder %s17, 7
    %p112 = por %p110, %p111
    %p113 = scmp.ne.s32.totalorder %s104, %s105
    %p114 = scmp.eq.s32.totalorder %s17, 0
    %p115 = por %p113, %p114
    %p116 = scmp.ne.s32.totalorder %s104, %s105
    %p117 = scmp.eq.s32.totalorder %s18, 7
    %p118 = por %p116, %p117
    %p120 = scmp.ne.s32.totalorder %s105, %s119
    %p121 = scmp.eq.s32.totalorder %s18, 0
    %p122 = por %p120, %p121
    %s123 = ssub.s32 %s19, %s31
    %s124 = ssub.s32 %s20, %s27
    %s125 = sor.u32 %s123, %s124
    %p126 = scmp.eq.s32.totalorder %s125, 0
    %s128 = sadd.s32 %s127, 1
    %s129 = scalar_select %p126, %s127, %s128
    %p132 = pneg %p126
    %p133 = scmp.eq.s32.totalorder %s12, 7
    %p134 = por %p132, %p133
    %p135 = scmp.ne.s32.totalorder %s127, %s130
    %p136 = scmp.eq.s32.totalorder %s12, 0
    %p137 = por %p135, %p136
    %p138 = scmp.ne.s32.totalorder %s127, %s130
    %p139 = scmp.eq.s32.totalorder %s17, 7
    %p140 = por %p138, %p139
    %p141 = scmp.ne.s32.totalorder %s130, %s131
    %p142 = scmp.eq.s32.totalorder %s17, 0
    %p143 = por %p141, %p142
    %p144 = scmp.ne.s32.totalorder %s130, %s131
    %p145 = scmp.eq.s32.totalorder %s18, 7
    %p146 = por %p144, %p145
    %p148 = scmp.ne.s32.totalorder %s131, %s147
    %p149 = scmp.eq.s32.totalorder %s18, 0
    %p150 = por %p148, %p149
    %s151 = ssub.s32 %s19, %s31
    %s152 = ssub.s32 %s20, %s27
    %s153 = sor.u32 %s151, %s152
    %p154 = scmp.eq.s32.totalorder %s153, 0
    %s156 = sadd.s32 %s155, 1
    %s157 = scalar_select %p154, %s155, %s156
    %p160 = pneg %p154
    %p161 = scmp.eq.s32.totalorder %s12, 7
    %p162 = por %p160, %p161
    %p163 = scmp.ne.s32.totalorder %s155, %s158
    %p164 = scmp.eq.s32.totalorder %s12, 0
    %p165 = por %p163, %p164
    %p166 = scmp.ne.s32.totalorder %s155, %s158
    %p167 = scmp.eq.s32.totalorder %s17, 7
    %p168 = por %p166, %p167
    %p169 = scmp.ne.s32.totalorder %s158, %s159
    %p170 = scmp.eq.s32.totalorder %s17, 0
    %p171 = por %p169, %p170
    %p172 = scmp.ne.s32.totalorder %s158, %s159
    %p173 = scmp.eq.s32.totalorder %s18, 7
    %p174 = por %p172, %p173
    %p176 = scmp.ne.s32.totalorder %s159, %s175
    %p177 = scmp.eq.s32.totalorder %s18, 0
    %p178 = por %p176, %p177
    %p179 = scmp.le.s32.totalorder 1, %s12
    %p180 = scmp.lt.s32.totalorder %s12, 9
    %p181 = pnand %p179, %p180
    %p182 = pneg %p181
    // Predicated region
    $region9: #{_up_layer_forward_impl.1} parent=5 // pred_check
      _
    $region10: #{_up_layer_forward_impl.1} parent=5 // pred_check_branch
      %184 = sbr.rel (%p181) target = $region12
    $region11: #{_up_layer_forward_impl.1} parent=5 // pred_region
      %s185 = ssub.s32 %s12, 1
      // Predicated region
      $region13: #{_up_layer_forward_impl.1} parent=11 // pred_check
        %p186 = pneg %p73
      $region14: #{_up_layer_forward_impl.1} parent=11 // pred_check_branch
        %188 = sbr.rel (%p186) target = $region16
      $region15: #{_up_layer_forward_impl.1} parent=11 // pred_region
        _
      $region16: #{_up_layer_forward_impl.1} parent=11 // pred_fallthru
        _
      // Predicated region
      $region17: #{_up_layer_forward_impl.1} parent=11 // pred_check
        %p189 = pneg %p94
      $region18: #{_up_layer_forward_impl.1} parent=11 // pred_check_branch
        %191 = sbr.rel (%p189) target = $region20
      $region19: #{_up_layer_forward_impl.1} parent=11 // pred_region
        _
      $region20: #{_up_layer_forward_impl.1} parent=11 // pred_fallthru
        _
      // Predicated region
      $region21: #{_up_layer_forward_impl.1} parent=11 // pred_check
        %p192 = pneg %p115
      $region22: #{_up_layer_forward_impl.1} parent=11 // pred_check_branch
        %194 = sbr.rel (%p192) target = $region24
      $region23: #{_up_layer_forward_impl.1} parent=11 // pred_region
        _
      $region24: #{_up_layer_forward_impl.1} parent=11 // pred_fallthru
        _
    $region12: #{_up_layer_forward_impl.1} parent=5 // pred_fallthru
      _
    %p195 = scmp.lt.s32.totalorder %s12, 8
    // Predicated region
    $region25: #{_up_layer_forward_impl.1} parent=5 // pred_check
      %p196 = pneg %p195
    $region26: #{_up_layer_forward_impl.1} parent=5 // pred_check_branch
      %198 = sbr.rel (%p196) target = $region28
    $region27: #{_up_layer_forward_impl.1} parent=5 // pred_region
      // Predicated region
      $region29: #{_up_layer_forward_impl.1} parent=27 // pred_check
        %p199 = pneg %p46
      $region30: #{_up_layer_forward_impl.1} parent=27 // pred_check_branch
        %201 = sbr.rel (%p199) target = $region32
      $region31: #{_up_layer_forward_impl.1} parent=27 // pred_region
        %p202 = scmp.lt.s32.totalorder %s19, 1
        %s203 = scalar_select %p202, %s19, 1
        %p204 = scmp.lt.s32.totalorder %s20, 3
        %s205 = scalar_select %p204, %s20, 3
        %s206 = smul.addr %s203, 4
        %s207 = sadd.s32 %s205, %s206
        %s208 = smul.addr %s207, 8
        %s209 = scalar_lea.vmem %s0, %s208
      $region32: #{_up_layer_forward_impl.1} parent=27 // pred_fallthru
        _
    $region28: #{_up_layer_forward_impl.1} parent=5 // pred_fallthru
      _
    %p210 = scmp.le.s32.totalorder 1, %s12
    %p211 = scmp.lt.s32.totalorder %s12, 9
    %p212 = pnand %p210, %p211
    %p213 = pneg %p212
    // Predicated region
    $region33: #{_up_layer_forward_impl.1} parent=5 // pred_check
      _
    $region34: #{_up_layer_forward_impl.1} parent=5 // pred_check_branch
      %215 = sbr.rel (%p212) target = $region36
    $region35: #{_up_layer_forward_impl.1} parent=5 // pred_region
      %s216 = ssub.s32 %s12, 1
      %p217 = scmp.lt.s32.totalorder %s21, 1
      %s218 = scalar_select %p217, %s21, 1
      %p219 = scmp.lt.s32.totalorder %s22, 3
      %s220 = scalar_select %p219, %s22, 3
      %s221 = smul.addr %s218, 4
      %s222 = sadd.s32 %s220, %s221
      %s223 = smul.addr %s222, 8
      %s224 = scalar_lea.vmem %s0, %s223
      %p225 = pneg %p52
      %p226 = pneg %p49
      %p227 = pneg %p73
      %p228 = pneg %p70
      %p229 = pneg %p94
      %p230 = pneg %p91
      %p231 = pneg %p115
      %p232 = pneg %p112
      %p233 = pneg %p143
      %p234 = pneg %p140
      %p235 = scmp.lt.s32.totalorder %s21, 1
      %s236 = scalar_select %p235, %s21, 1
      %p237 = scmp.lt.s32.totalorder %s22, 3
      %s238 = scalar_select %p237, %s22, 3
      %s239 = smul.addr %s238, 2
      %s240 = smul.addr %s236, 8
      %s241 = sadd.s32 %s239, %s240
      %s242 = smul.addr %s241, 4
      %s243 = scalar_lea.vmem %s4, %s242
      %p244 = pneg %p171
      %p245 = pneg %p168
      %p246 = scmp.lt.s32.totalorder %s21, 1
      %s247 = scalar_select %p246, %s21, 1
      %p248 = scmp.lt.s32.totalorder %s22, 3
      %s249 = scalar_select %p248, %s22, 3
      %s250 = smul.addr %s249, 2
      %s251 = smul.addr %s247, 8
      %s252 = sadd.s32 %s250, %s251
      %s253 = smul.addr %s252, 4
      %s254 = scalar_lea.vmem %s5, %s253
      %p255 = scmp.lt.s32.totalorder %s21, 1
      %s256 = scalar_select %p255, %s21, 1
      %p257 = scmp.lt.s32.totalorder %s22, 3
      %s258 = scalar_select %p257, %s22, 3
      %s259 = smul.addr %s256, 4
      %s260 = sadd.s32 %s258, %s259
      %s261 = smul.addr %s260, 8
      %s262 = scalar_lea.vmem %s0, %s261
      %p263 = scmp.lt.s32.totalorder %s21, 1
      %s264 = scalar_select %p263, %s21, 1
      %p265 = scmp.lt.s32.totalorder %s22, 3
      %s266 = scalar_select %p265, %s22, 3
      %s267 = smul.addr %s266, 2
      %s268 = smul.addr %s264, 8
      %s269 = sadd.s32 %s267, %s268
      %s270 = smul.addr %s269, 4
      %s271 = scalar_lea.vmem %s4, %s270
      %p272 = scmp.lt.s32.totalorder %s21, 1
      %s273 = scalar_select %p272, %s21, 1
      %p274 = scmp.lt.s32.totalorder %s22, 3
      %s275 = scalar_select %p274, %s22, 3
      %s276 = smul.addr %s275, 2
      %s277 = smul.addr %s273, 8
      %s278 = sadd.s32 %s276, %s277
      %s279 = smul.addr %s278, 4
      %s280 = scalar_lea.vmem %s5, %s279
      %v281 = vld [vmem:[%s2] sm:$0x3]
      %v282 = vld [vmem:[%s3] sm:$0x3]
      %v283 = vld [vmem:[%s262] sm:$0xf]
      %v284 = vld [vmem:[%s1] sm:$0xff]
      %v285 = vld [vmem:[%s1 + $0x8] sm:$0xff]
      %v286 = vld [vmem:[%s1 + $0x10] sm:$0xff]
      %v287 = vld [vmem:[%s1 + $0x18] sm:$0xff]
      %v288 = vld [vmem:[%s1 + $0x20] sm:$0xff]
      %v289 = vld [vmem:[%s1 + $0x28] sm:$0xff]
      %v290 = vld [vmem:[%s1 + $0x30] sm:$0xff]
      %v291 = vld [vmem:[%s1 + $0x38] sm:$0xff]
      %v292 = vld [vmem:[%s1 + $0x40] sm:$0xff]
      %v293 = vld [vmem:[%s1 + $0x48] sm:$0xff]
      %v294 = vld [vmem:[%s1 + $0x50] sm:$0xff]
      %v295 = vld [vmem:[%s1 + $0x58] sm:$0xff]
      %v296 = vld [vmem:[%s1 + $0x60] sm:$0xff]
      %v297 = vld [vmem:[%s1 + $0x68] sm:$0xff]
      %v298 = vld [vmem:[%s1 + $0x70] sm:$0xff]
      %v299 = vld [vmem:[%s1 + $0x78] sm:$0xff]
      %v300 = vld [vmem:[%s1 + $0x80] sm:$0xff]
      %v301 = vld [vmem:[%s1 + $0x88] sm:$0xff]
      %v302 = vld [vmem:[%s262 + $0x1] sm:$0xf]
      %s303 = scalar_lea.vmem %s1, 144
      %v304 = vld [vmem:[%s303] sm:$0xff]
      %v305 = vld [vmem:[%s303 + $0x8] sm:$0xff]
      %v306 = vld [vmem:[%s303 + $0x10] sm:$0xff]
      %v307 = vld [vmem:[%s303 + $0x18] sm:$0xff]
      %v308 = vld [vmem:[%s303 + $0x20] sm:$0xff]
      %v309 = vld [vmem:[%s303 + $0x28] sm:$0xff]
      %v310 = vld [vmem:[%s303 + $0x30] sm:$0xff]
      %v311 = vld [vmem:[%s303 + $0x38] sm:$0xff]
      %v312 = vld [vmem:[%s303 + $0x40] sm:$0xff]
      %v313 = vld [vmem:[%s303 + $0x48] sm:$0xff]
      %v314 = vld [vmem:[%s303 + $0x50] sm:$0xff]
      %v315 = vld [vmem:[%s303 + $0x58] sm:$0xff]
      %v316 = vld [vmem:[%s303 + $0x60] sm:$0xff]
      %v317 = vld [vmem:[%s303 + $0x68] sm:$0xff]
      %v318 = vld [vmem:[%s303 + $0x70] sm:$0xff]
      %v319 = vld [vmem:[%s303 + $0x78] sm:$0xff]
      %v320 = vld [vmem:[%s303 + $0x80] sm:$0xff]
      %v321 = vld [vmem:[%s303 + $0x88] sm:$0xff]
      %vm322 = vcmask 588800
      %v324 = vsel %vm322, %v302, 0
      %326 = vmatprep.subr.mxu0 0.0
      %327 = vmatpush1.msra.mxu0 0.0
      %328 = vmatprep.subr.mxu0 0.0
      %329 = vmatpush1.msra.mxu0 0.0
      %330 = vmatprep.subr.mxu0 0.0
      %331 = vmatpush1.msra.mxu0 0.0
      %332 = vmatprep.subr.mxu0 0.0
      %333 = vmatpush1.msra.mxu0 0.0
      %334 = vmatprep.subr.mxu0 0.0
      %335 = vmatpush1.msra.mxu0 0.0
      %336 = vmatprep.subr.mxu0 0.0
      %337 = vmatpush1.msra.mxu0 0.0
      %338 = vmatprep.subr.mxu0 0.0
      %339 = vmatpush1.msra.mxu0 0.0
      %340 = vmatprep.subr.mxu0 %v321
      %341 = vmatpush1.msra.mxu0 %v320
      %342 = vmatprep.subr.mxu0 %v319
      %343 = vmatpush1.msra.mxu0 %v318
      %344 = vmatprep.subr.mxu0 %v317
      %345 = vmatpush1.msra.mxu0 %v316
      %346 = vmatprep.subr.mxu0 %v315
      %347 = vmatpush1.msra.mxu0 %v314
      %348 = vmatprep.subr.mxu0 %v313
      %349 = vmatpush1.msra.mxu0 %v312
      %350 = vmatprep.subr.mxu0 %v311
      %351 = vmatpush1.msra.mxu0 %v310
      %352 = vmatprep.subr.mxu0 %v309
      %353 = vmatpush1.msra.mxu0 %v308
      %354 = vmatprep.subr.mxu0 %v307
      %355 = vmatpush1.msra.mxu0 %v306
      %356 = vmatprep.subr.mxu0 %v305
      %357 = vmatpush1.msra.mxu0 %v304
      %358 = vmatprep.subr.mxu0 0.0
      %359 = vmatpush2.msra.mxu0 0.0
      %360 = vmatprep.subr.mxu0 0.0
      %361 = vmatpush2.msra.mxu0 0.0
      %362 = vmatprep.subr.mxu0 0.0
      %363 = vmatpush2.msra.mxu0 0.0
      %364 = vmatprep.subr.mxu0 0.0
      %365 = vmatpush2.msra.mxu0 0.0
      %366 = vmatprep.subr.mxu0 0.0
      %367 = vmatpush2.msra.mxu0 0.0
      %368 = vmatprep.subr.mxu0 0.0
      %369 = vmatpush2.msra.mxu0 0.0
      %370 = vmatprep.subr.mxu0 0.0
      %371 = vmatpush2.msra.mxu0 0.0
      %372 = vmatprep.subr.mxu0 0.0
      %373 = vmatpush2.msra.mxu0 0.0
      %374 = vmatprep.subr.mxu0 0.0
      %375 = vmatpush2.msra.mxu0 0.0
      %376 = vmatprep.subr.mxu0 0.0
      %377 = vmatpush2.msra.mxu0 0.0
      %378 = vmatprep.subr.mxu0 0.0
      %379 = vmatpush2.msra.mxu0 0.0
      %380 = vmatprep.subr.mxu0 0.0
      %381 = vmatpush2.msra.mxu0 0.0
      %382 = vmatprep.subr.mxu0 0.0
      %383 = vmatpush2.msra.mxu0 0.0
      %384 = vmatprep.subr.mxu0 0.0
      %385 = vmatpush2.msra.mxu0 0.0
      %386 = vmatprep.subr.mxu0 0.0
      %387 = vmatpush2.msra.mxu0 0.0
      %388 = vmatprep.subr.mxu0 0.0
      %389 = vmatpush2.msra.mxu0 0.0
      %390 = vmatprep.mubr.f32.mxu0 0.0
      %391 = vmatmul.mubr.f32.gmra.mxu0 %v324
      %v392 = vpop.f32.mrf.mxu0
      %v393 = vadd.f32 0.0, %v392
      %v394 = vpop.f32.mrf.mxu0
      %v395 = vadd.f32 0.0, %v394
      %396 = vdwg.mxu0
      %v398 = vsel %vm322, %v283, 0
      %400 = vmatprep.subr.mxu0 0.0
      %401 = vmatpush1.msra.mxu0 0.0
      %402 = vmatprep.subr.mxu0 0.0
      %403 = vmatpush1.msra.mxu0 0.0
      %404 = vmatprep.subr.mxu0 0.0
      %405 = vmatpush1.msra.mxu0 0.0
      %406 = vmatprep.subr.mxu0 0.0
      %407 = vmatpush1.msra.mxu0 0.0
      %408 = vmatprep.subr.mxu0 0.0
      %409 = vmatpush1.msra.mxu0 0.0
      %410 = vmatprep.subr.mxu0 0.0
      %411 = vmatpush1.msra.mxu0 0.0
      %412 = vmatprep.subr.mxu0 0.0
      %413 = vmatpush1.msra.mxu0 0.0
      %414 = vmatprep.subr.mxu0 %v301
      %415 = vmatpush1.msra.mxu0 %v300
      %416 = vmatprep.subr.mxu0 %v299
      %417 = vmatpush1.msra.mxu0 %v298
      %418 = vmatprep.subr.mxu0 %v297
      %419 = vmatpush1.msra.mxu0 %v296
      %420 = vmatprep.subr.mxu0 %v295
      %421 = vmatpush1.msra.mxu0 %v294
      %422 = vmatprep.subr.mxu0 %v293
      %423 = vmatpush1.msra.mxu0 %v292
      %424 = vmatprep.subr.mxu0 %v291
      %425 = vmatpush1.msra.mxu0 %v290
      %426 = vmatprep.subr.mxu0 %v289
      %427 = vmatpush1.msra.mxu0 %v288
      %428 = vmatprep.subr.mxu0 %v287
      %429 = vmatpush1.msra.mxu0 %v286
      %430 = vmatprep.subr.mxu0 %v285
      %431 = vmatpush1.msra.mxu0 %v284
      %432 = vmatprep.subr.mxu0 0.0
      %433 = vmatpush2.msra.mxu0 0.0
      %434 = vmatprep.subr.mxu0 0.0
      %435 = vmatpush2.msra.mxu0 0.0
      %436 = vmatprep.subr.mxu0 0.0
      %437 = vmatpush2.msra.mxu0 0.0
      %438 = vmatprep.subr.mxu0 0.0
      %439 = vmatpush2.msra.mxu0 0.0
      %440 = vmatprep.subr.mxu0 0.0
      %441 = vmatpush2.msra.mxu0 0.0
      %442 = vmatprep.subr.mxu0 0.0
      %443 = vmatpush2.msra.mxu0 0.0
      %444 = vmatprep.subr.mxu0 0.0
      %445 = vmatpush2.msra.mxu0 0.0
      %446 = vmatprep.subr.mxu0 0.0
      %447 = vmatpush2.msra.mxu0 0.0
      %448 = vmatprep.subr.mxu0 0.0
      %449 = vmatpush2.msra.mxu0 0.0
      %450 = vmatprep.subr.mxu0 0.0
      %451 = vmatpush2.msra.mxu0 0.0
      %452 = vmatprep.subr.mxu0 0.0
      %453 = vmatpush2.msra.mxu0 0.0
      %454 = vmatprep.subr.mxu0 0.0
      %455 = vmatpush2.msra.mxu0 0.0
      %456 = vmatprep.subr.mxu0 0.0
      %457 = vmatpush2.msra.mxu0 0.0
      %458 = vmatprep.subr.mxu0 0.0
      %459 = vmatpush2.msra.mxu0 0.0
      %460 = vmatprep.subr.mxu0 0.0
      %461 = vmatpush2.msra.mxu0 0.0
      %462 = vmatprep.subr.mxu0 0.0
      %463 = vmatpush2.msra.mxu0 0.0
      %464 = vmatprep.mubr.f32.mxu0 0.0
      %465 = vmatmul.mubr.f32.gmra.mxu0 %v398
      %v466 = vpop.f32.mrf.mxu0
      %v467 = vadd.f32 %v393, %v466
      %v468 = vpop.f32.mrf.mxu0
      %v469 = vadd.f32 %v395, %v468
      %470 = vdwg.mxu0
      %v472 = vlaneseq
      %v473 = vshrl.u32 %v472, 7
      %v474 = vsub.s32 0, %v473
      %v475 = vrot.slane %v281, %v474
      %v476 = vlaneseq
      %v477 = vshrl.u32 %v476, 7
      %v478 = vsub.s32 1, %v477
      %v479 = vrot.slane %v281, %v478
      %v482 = vmul.f32 %v467, %v475
      %v483 = vmul.f32 %v469, %v479
      %v485 = vlaneseq
      %v486 = vshrl.u32 %v485, 7
      %v487 = vsub.s32 0, %v486
      %v488 = vrot.slane %v282, %v487
      %v489 = vlaneseq
      %v490 = vshrl.u32 %v489, 7
      %v491 = vsub.s32 1, %v490
      %v492 = vrot.slane %v282, %v491
      %v495 = vadd.f32 %v482, %v488
      %v496 = vadd.f32 %v483, %v492
      %v497 = vmax.f32 %v495, 0.0
      %v498 = vmax.f32 %v496, 0.0
      %v501 = vcombine.low %v497, %v498
      %503 = vst [vmem:[%s271] sm:$0xff] %v501
      %v504 = vld [vmem:[%s262 + $0x1] sm:$0xf]
      %s505 = scalar_lea.vmem %s1, 288
      %v506 = vld [vmem:[%s505] sm:$0xff]
      %v507 = vld [vmem:[%s505 + $0x8] sm:$0xff]
      %v508 = vld [vmem:[%s505 + $0x10] sm:$0xff]
      %v509 = vld [vmem:[%s505 + $0x18] sm:$0xff]
      %v510 = vld [vmem:[%s505 + $0x20] sm:$0xff]
      %v511 = vld [vmem:[%s505 + $0x28] sm:$0xff]
      %v512 = vld [vmem:[%s505 + $0x30] sm:$0xff]
      %v513 = vld [vmem:[%s505 + $0x38] sm:$0xff]
      %v514 = vld [vmem:[%s505 + $0x40] sm:$0xff]
      %v515 = vld [vmem:[%s505 + $0x48] sm:$0xff]
      %v516 = vld [vmem:[%s505 + $0x50] sm:$0xff]
      %v517 = vld [vmem:[%s505 + $0x58] sm:$0xff]
      %v518 = vld [vmem:[%s505 + $0x60] sm:$0xff]
      %v519 = vld [vmem:[%s505 + $0x68] sm:$0xff]
      %v520 = vld [vmem:[%s505 + $0x70] sm:$0xff]
      %v521 = vld [vmem:[%s505 + $0x78] sm:$0xff]
      %v522 = vld [vmem:[%s505 + $0x80] sm:$0xff]
      %v523 = vld [vmem:[%s505 + $0x88] sm:$0xff]
      %v524 = vld [vmem:[%s262 + $0x2] sm:$0xf]
      %s525 = scalar_lea.vmem %s1, 432
      %v526 = vld [vmem:[%s525] sm:$0xff]
      %v527 = vld [vmem:[%s525 + $0x8] sm:$0xff]
      %v528 = vld [vmem:[%s525 + $0x10] sm:$0xff]
      %v529 = vld [vmem:[%s525 + $0x18] sm:$0xff]
      %v530 = vld [vmem:[%s525 + $0x20] sm:$0xff]
      %v531 = vld [vmem:[%s525 + $0x28] sm:$0xff]
      %v532 = vld [vmem:[%s525 + $0x30] sm:$0xff]
      %v533 = vld [vmem:[%s525 + $0x38] sm:$0xff]
      %v534 = vld [vmem:[%s525 + $0x40] sm:$0xff]
      %v535 = vld [vmem:[%s525 + $0x48] sm:$0xff]
      %v536 = vld [vmem:[%s525 + $0x50] sm:$0xff]
      %v537 = vld [vmem:[%s525 + $0x58] sm:$0xff]
      %v538 = vld [vmem:[%s525 + $0x60] sm:$0xff]
      %v539 = vld [vmem:[%s525 + $0x68] sm:$0xff]
      %v540 = vld [vmem:[%s525 + $0x70] sm:$0xff]
      %v541 = vld [vmem:[%s525 + $0x78] sm:$0xff]
      %v542 = vld [vmem:[%s525 + $0x80] sm:$0xff]
      %v543 = vld [vmem:[%s525 + $0x88] sm:$0xff]
      %v545 = vsel %vm322, %v524, 0
      %547 = vmatprep.subr.mxu0 0.0
      %548 = vmatpush1.msra.mxu0 0.0
      %549 = vmatprep.subr.mxu0 0.0
      %550 = vmatpush1.msra.mxu0 0.0
      %551 = vmatprep.subr.mxu0 0.0
      %552 = vmatpush1.msra.mxu0 0.0
      %553 = vmatprep.subr.mxu0 0.0
      %554 = vmatpush1.msra.mxu0 0.0
      %555 = vmatprep.subr.mxu0 0.0
      %556 = vmatpush1.msra.mxu0 0.0
      %557 = vmatprep.subr.mxu0 0.0
      %558 = vmatpush1.msra.mxu0 0.0
      %559 = vmatprep.subr.mxu0 0.0
      %560 = vmatpush1.msra.mxu0 0.0
      %561 = vmatprep.subr.mxu0 %v543
      %562 = vmatpush1.msra.mxu0 %v542
      %563 = vmatprep.subr.mxu0 %v541
      %564 = vmatpush1.msra.mxu0 %v540
      %565 = vmatprep.subr.mxu0 %v539
      %566 = vmatpush1.msra.mxu0 %v538
      %567 = vmatprep.subr.mxu0 %v537
      %568 = vmatpush1.msra.mxu0 %v536
      %569 = vmatprep.subr.mxu0 %v535
      %570 = vmatpush1.msra.mxu0 %v534
      %571 = vmatprep.subr.mxu0 %v533
      %572 = vmatpush1.msra.mxu0 %v532
      %573 = vmatprep.subr.mxu0 %v531
      %574 = vmatpush1.msra.mxu0 %v530
      %575 = vmatprep.subr.mxu0 %v529
      %576 = vmatpush1.msra.mxu0 %v528
      %577 = vmatprep.subr.mxu0 %v527
      %578 = vmatpush1.msra.mxu0 %v526
      %579 = vmatprep.subr.mxu0 0.0
      %580 = vmatpush2.msra.mxu0 0.0
      %581 = vmatprep.subr.mxu0 0.0
      %582 = vmatpush2.msra.mxu0 0.0
      %583 = vmatprep.subr.mxu0 0.0
      %584 = vmatpush2.msra.mxu0 0.0
      %585 = vmatprep.subr.mxu0 0.0
      %586 = vmatpush2.msra.mxu0 0.0
      %587 = vmatprep.subr.mxu0 0.0
      %588 = vmatpush2.msra.mxu0 0.0
      %589 = vmatprep.subr.mxu0 0.0
      %590 = vmatpush2.msra.mxu0 0.0
      %591 = vmatprep.subr.mxu0 0.0
      %592 = vmatpush2.msra.mxu0 0.0
      %593 = vmatprep.subr.mxu0 0.0
      %594 = vmatpush2.msra.mxu0 0.0
      %595 = vmatprep.subr.mxu0 0.0
      %596 = vmatpush2.msra.mxu0 0.0
      %597 = vmatprep.subr.mxu0 0.0
      %598 = vmatpush2.msra.mxu0 0.0
      %599 = vmatprep.subr.mxu0 0.0
      %600 = vmatpush2.msra.mxu0 0.0
      %601 = vmatprep.subr.mxu0 0.0
      %602 = vmatpush2.msra.mxu0 0.0
      %603 = vmatprep.subr.mxu0 0.0
      %604 = vmatpush2.msra.mxu0 0.0
      %605 = vmatprep.subr.mxu0 0.0
      %606 = vmatpush2.msra.mxu0 0.0
      %607 = vmatprep.subr.mxu0 0.0
      %608 = vmatpush2.msra.mxu0 0.0
      %609 = vmatprep.subr.mxu0 0.0
      %610 = vmatpush2.msra.mxu0 0.0
      %611 = vmatprep.mubr.f32.mxu0 0.0
      %612 = vmatmul.mubr.f32.gmra.mxu0 %v545
      %v613 = vpop.f32.mrf.mxu0
      %v614 = vadd.f32 0.0, %v613
      %v615 = vpop.f32.mrf.mxu0
      %v616 = vadd.f32 0.0, %v615
      %617 = vdwg.mxu0
      %v619 = vsel %vm322, %v504, 0
      %621 = vmatprep.subr.mxu0 0.0
      %622 = vmatpush1.msra.mxu0 0.0
      %623 = vmatprep.subr.mxu0 0.0
      %624 = vmatpush1.msra.mxu0 0.0
      %625 = vmatprep.subr.mxu0 0.0
      %626 = vmatpush1.msra.mxu0 0.0
      %627 = vmatprep.subr.mxu0 0.0
      %628 = vmatpush1.msra.mxu0 0.0
      %629 = vmatprep.subr.mxu0 0.0
      %630 = vmatpush1.msra.mxu0 0.0
      %631 = vmatprep.subr.mxu0 0.0
      %632 = vmatpush1.msra.mxu0 0.0
      %633 = vmatprep.subr.mxu0 0.0
      %634 = vmatpush1.msra.mxu0 0.0
      %635 = vmatprep.subr.mxu0 %v523
      %636 = vmatpush1.msra.mxu0 %v522
      %637 = vmatprep.subr.mxu0 %v521
      %638 = vmatpush1.msra.mxu0 %v520
      %639 = vmatprep.subr.mxu0 %v519
      %640 = vmatpush1.msra.mxu0 %v518
      %641 = vmatprep.subr.mxu0 %v517
      %642 = vmatpush1.msra.mxu0 %v516
      %643 = vmatprep.subr.mxu0 %v515
      %644 = vmatpush1.msra.mxu0 %v514
      %645 = vmatprep.subr.mxu0 %v513
      %646 = vmatpush1.msra.mxu0 %v512
      %647 = vmatprep.subr.mxu0 %v511
      %648 = vmatpush1.msra.mxu0 %v510
      %649 = vmatprep.subr.mxu0 %v509
      %650 = vmatpush1.msra.mxu0 %v508
      %651 = vmatprep.subr.mxu0 %v507
      %652 = vmatpush1.msra.mxu0 %v506
      %653 = vmatprep.subr.mxu0 0.0
      %654 = vmatpush2.msra.mxu0 0.0
      %655 = vmatprep.subr.mxu0 0.0
      %656 = vmatpush2.msra.mxu0 0.0
      %657 = vmatprep.subr.mxu0 0.0
      %658 = vmatpush2.msra.mxu0 0.0
      %659 = vmatprep.subr.mxu0 0.0
      %660 = vmatpush2.msra.mxu0 0.0
      %661 = vmatprep.subr.mxu0 0.0
      %662 = vmatpush2.msra.mxu0 0.0
      %663 = vmatprep.subr.mxu0 0.0
      %664 = vmatpush2.msra.mxu0 0.0
      %665 = vmatprep.subr.mxu0 0.0
      %666 = vmatpush2.msra.mxu0 0.0
      %667 = vmatprep.subr.mxu0 0.0
      %668 = vmatpush2.msra.mxu0 0.0
      %669 = vmatprep.subr.mxu0 0.0
      %670 = vmatpush2.msra.mxu0 0.0
      %671 = vmatprep.subr.mxu0 0.0
      %672 = vmatpush2.msra.mxu0 0.0
      %673 = vmatprep.subr.mxu0 0.0
      %674 = vmatpush2.msra.mxu0 0.0
      %675 = vmatprep.subr.mxu0 0.0
      %676 = vmatpush2.msra.mxu0 0.0
      %677 = vmatprep.subr.mxu0 0.0
      %678 = vmatpush2.msra.mxu0 0.0
      %679 = vmatprep.subr.mxu0 0.0
      %680 = vmatpush2.msra.mxu0 0.0
      %681 = vmatprep.subr.mxu0 0.0
      %682 = vmatpush2.msra.mxu0 0.0
      %683 = vmatprep.subr.mxu0 0.0
      %684 = vmatpush2.msra.mxu0 0.0
      %685 = vmatprep.mubr.f32.mxu0 0.0
      %686 = vmatmul.mubr.f32.gmra.mxu0 %v619
      %v687 = vpop.f32.mrf.mxu0
      %v688 = vadd.f32 %v614, %v687
      %v689 = vpop.f32.mrf.mxu0
      %v690 = vadd.f32 %v616, %v689
      %691 = vdwg.mxu0
      %v692 = vmul.f32 %v688, %v475
      %v693 = vmul.f32 %v690, %v479
      %v694 = vadd.f32 %v692, %v488
      %v695 = vadd.f32 %v693, %v492
      %v696 = vmax.f32 %v694, 0.0
      %v697 = vmax.f32 %v695, 0.0
      %v700 = vcombine.low %v696, %v697
      %702 = vst [vmem:[%s280] sm:$0xff] %v700
      %p703 = scmp.lt.s32.totalorder %s21, 1
      %s704 = scalar_select %p703, %s21, 1
      %p705 = scmp.lt.s32.totalorder %s22, 3
      %s706 = scalar_select %p705, %s22, 3
      %s707 = smul.addr %s706, 2
      %s708 = smul.addr %s704, 8
      %s709 = sadd.s32 %s707, %s708
      %s710 = smul.addr %s709, 4
      %s711 = scalar_lea.vmem %s4, %s710
      %p712 = scmp.lt.s32.totalorder %s21, 1
      %s713 = scalar_select %p712, %s21, 1
      %p714 = scmp.lt.s32.totalorder %s22, 3
      %s715 = scalar_select %p714, %s22, 3
      %s716 = smul.addr %s715, 2
      %s717 = smul.addr %s713, 8
      %s718 = sadd.s32 %s716, %s717
      %s719 = smul.addr %s718, 4
      %s720 = scalar_lea.vmem %s5, %s719
      // Predicated region
      $region37: #{_up_layer_forward_impl.1} parent=35 // pred_check
        %p721 = pneg %p140
      $region38: #{_up_layer_forward_impl.1} parent=35 // pred_check_branch
        %723 = sbr.rel (%p721) target = $region40
      $region39: #{_up_layer_forward_impl.1} parent=35 // pred_region
        _
      $region40: #{_up_layer_forward_impl.1} parent=35 // pred_fallthru
        _
      // Predicated region
      $region41: #{_up_layer_forward_impl.1} parent=35 // pred_check
        %p724 = pneg %p168
      $region42: #{_up_layer_forward_impl.1} parent=35 // pred_check_branch
        %726 = sbr.rel (%p724) target = $region44
      $region43: #{_up_layer_forward_impl.1} parent=35 // pred_region
        _
      $region44: #{_up_layer_forward_impl.1} parent=35 // pred_fallthru
        _
    $region36: #{_up_layer_forward_impl.1} parent=5 // pred_fallthru
      _
    %p727 = scmp.le.s32.totalorder 2, %s12
    // Predicated region
    $region45: #{_up_layer_forward_impl.1} parent=5 // pred_check
      %p728 = pneg %p727
    $region46: #{_up_layer_forward_impl.1} parent=5 // pred_check_branch
      %730 = sbr.rel (%p728) target = $region48
    $region47: #{_up_layer_forward_impl.1} parent=5 // pred_region
      %s731 = ssub.s32 %s12, 2
      // Predicated region
      $region49: #{_up_layer_forward_impl.1} parent=47 // pred_check
        %p732 = pneg %p146
      $region50: #{_up_layer_forward_impl.1} parent=47 // pred_check_branch
        %734 = sbr.rel (%p732) target = $region52
      $region51: #{_up_layer_forward_impl.1} parent=47 // pred_region
        %p735 = scmp.lt.s32.totalorder %s23, 1
        %s736 = scalar_select %p735, %s23, 1
        %p737 = scmp.lt.s32.totalorder %s24, 3
        %s738 = scalar_select %p737, %s24, 3
        %s739 = smul.addr %s738, 2
        %s740 = smul.addr %s736, 8
        %s741 = sadd.s32 %s739, %s740
        %s742 = smul.addr %s741, 4
        %s743 = scalar_lea.vmem %s4, %s742
      $region52: #{_up_layer_forward_impl.1} parent=47 // pred_fallthru
        _
      // Predicated region
      $region53: #{_up_layer_forward_impl.1} parent=47 // pred_check
        %p744 = pneg %p174
      $region54: #{_up_layer_forward_impl.1} parent=47 // pred_check_branch
        %746 = sbr.rel (%p744) target = $region56
      $region55: #{_up_layer_forward_impl.1} parent=47 // pred_region
        %p747 = scmp.lt.s32.totalorder %s23, 1
        %s748 = scalar_select %p747, %s23, 1
        %p749 = scmp.lt.s32.totalorder %s24, 3
        %s750 = scalar_select %p749, %s24, 3
        %s751 = smul.addr %s750, 2
        %s752 = smul.addr %s748, 8
        %s753 = sadd.s32 %s751, %s752
        %s754 = smul.addr %s753, 4
        %s755 = scalar_lea.vmem %s5, %s754
      $region56: #{_up_layer_forward_impl.1} parent=47 // pred_fallthru
        _
    $region48: #{_up_layer_forward_impl.1} parent=5 // pred_fallthru
      _
  $region6: #{_up_layer_forward_impl.1} parent=0 // loop_footer
    %s16 = sadd.s32 1, %s12
  $region7: #{_up_layer_forward_impl.1} parent=0 // loop_footer_branch
    %11 = sbr.rel target = $region3
  $region8: #{_up_layer_forward_impl.1} parent=0 // loop_exit
    _

</llo_original>
